<compile_context>
chip_gen: v7x
topology: tpu7x:2x2x1
jax: 0.10.0
libtpu: 0.0.40
codegen_flags: <defaults>
</compile_context>

<pallas_src>
import jax
import jax.numpy as jnp
from jax.experimental import pallas as pl
from jax.experimental.pallas import tpu as pltpu


def _offset_head_kernel(x_ref, w_ref, b_ref, o_ref):
    # x_ref: (C_in, THW), w_ref: (C_out, C_in), b_ref: (C_out, 1),
    # o_ref: (C_out, THW)  -- lane-dense output (THW multiple of 128 except
    # for the masked ragged last tile / tiny-image full-extent block).
    x = x_ref[...].astype(jnp.bfloat16)
    w = w_ref[...].astype(jnp.bfloat16)
    acc = jnp.dot(w, x, preferred_element_type=jnp.float32)
    o_ref[...] = (acc + b_ref[...]).astype(o_ref.dtype)


def _pick_thw(hw, c_in, c_out, n, dtype_bytes=4,
              target_block_bytes=4 * 1024 * 1024, min_total_steps=8):
    """Spatial tile size (lane count per grid step).

    - multiple of 128 (lane-dense stores) unless the whole H*W is < 128,
    - sized so the combined in+out block is ~target_block_bytes (amortizes
      per-step overhead; double-buffered footprint ~2x that, VMEM-safe on
      v5e/v6e/v7x),
    - shrunk if needed so the total grid has >= min_total_steps steps
      (feeds both v7x TensorCores, keeps the pipeline busy).
    """
    if hw < 128:
        # Full spatial extent as a single (masked) block; block dim == full
        # array dim satisfies the BlockSpec divisibility rule.
        return hw
    per_col_bytes = (c_in + c_out) * dtype_bytes
    cap = max(128, (target_block_bytes // per_col_bytes) // 128 * 128)
    thw = min(cap, (hw // 128) * 128)
    # Guarantee enough grid steps for megacore sharding / pipelining.
    while n * pl.cdiv(hw, thw) < min_total_steps and thw > 128:
        thw = max(128, (thw // 2) // 128 * 128)
    return thw


def offset_head_forward(x_nchw, w_vec, b_vec, w_sca, b_sca):
    """x_nchw: (N, C_in, H, W) float32.
    w_vec: (C_vec, C_in), b_vec: (C_vec,)   -- vector_offset 1x1 conv
    w_sca: (C_sca, C_in), b_sca: (C_sca,)   -- scalar_offset 1x1 conv
    Returns offset_field: (N, C_vec + C_sca, H, W), matching
    torch.cat((vector_offset(x), scalar_offset(x)), dim=1).
    """
    N, C_in, H, W = x_nchw.shape
    HW = H * W

    # Fuse the two convs: concat along output channels (vec first, then scalar).
    w_cat = jnp.concatenate([w_vec, w_sca], axis=0)          # (C_out, C_in)
    b_cat = jnp.concatenate([b_vec, b_sca], axis=0)          # (C_out,)
    C_out = w_cat.shape[0]
    b_col = b_cat.reshape(C_out, 1)                           # (C_out, 1)

    # Free, contiguous reshape: NCHW -> (N, C_in, H*W). No transposes.
    x3 = x_nchw.reshape(N, C_in, HW)

    thw = _pick_thw(HW, C_in, C_out, N)
    hw_tiles = pl.cdiv(HW, thw)

    cost = pl.CostEstimate(
        flops=2 * N * HW * C_in * C_out,
        transcendentals=0,
        bytes_accessed=4 * (N * HW * C_in + N * HW * C_out
                            + C_in * C_out + C_out),
    )

    out3 = pl.pallas_call(
        _offset_head_kernel,
        out_shape=jax.ShapeDtypeStruct((N, C_out, HW), x_nchw.dtype),
        grid_spec=pltpu.PrefetchScalarGridSpec(
            num_scalar_prefetch=0,
            grid=(N, hw_tiles),
            in_specs=[
                # N dim squeezed out; kernel sees (C_in, THW).
                pl.BlockSpec((None, C_in, thw), lambda n, t: (n, 0, t)),
                # Constant weight / bias blocks (same block every step -> no
                # re-DMA after the first fetch).
                pl.BlockSpec((C_out, C_in), lambda n, t: (0, 0)),
                pl.BlockSpec((C_out, 1), lambda n, t: (0, 0)),
            ],
            out_specs=pl.BlockSpec((None, C_out, thw), lambda n, t: (n, 0, t)),
        ),
        compiler_params=pltpu.CompilerParams(
            dimension_semantics=("parallel", "parallel")),
        cost_estimate=cost,
    )(x3, w_cat, b_col)

    # Free reshape back: (N, C_out, H*W) -> (N, C_out, H, W). Already NCHW.
    return out3.reshape(N, C_out, H, W)


def _reference(x, w_vec, b_vec, w_sca, b_sca):
    vec = jnp.einsum('oc,nchw->nohw', w_vec, x) + b_vec[None, :, None, None]
    ht = jnp.einsum('oc,nchw->nohw', w_sca, x) + b_sca[None, :, None, None]
    return jnp.concatenate([vec, ht], axis=1)


if __name__ == "__main__":
    # Module config (small, consistent with the constructor's constraint
    # out_channels_vector == 3 * out_channels_scalar).
    in_channels = 16
    out_channels_scalar = 4
    out_channels_vector = out_channels_scalar * 3
    heatmap_kernel_size = 1  # unused in forward

    key = jax.random.PRNGKey(0)
    k_x, k_wv, k_ws, k_x2 = jax.random.split(key, 4)

    # init_weights(): normal(std=0.001) for weights, zeros for biases.
    w_vec = 0.001 * jax.random.normal(
        k_wv, (out_channels_vector, in_channels), dtype=jnp.float32)
    b_vec = jnp.zeros((out_channels_vector,), dtype=jnp.float32)
    w_sca = 0.001 * jax.random.normal(
        k_ws, (out_channels_scalar, in_channels), dtype=jnp.float32)
    b_sca = jnp.zeros((out_channels_scalar,), dtype=jnp.float32)

    # bf16 matmul operands (f32 accumulation) -> slightly relaxed tolerance
    # vs. the pure-f32 einsum reference.
    atol, rtol = 5e-4, 5e-2

    # --- Case 1: 128-divisible spatial extent (lane-dense, unmasked path) ---
    N, H, W = 2, 16, 16
    x = jax.random.normal(k_x, (N, in_channels, H, W), dtype=jnp.float32)
    out = jax.block_until_ready(offset_head_forward(x, w_vec, b_vec, w_sca, b_sca))
    ref = _reference(x, w_vec, b_vec, w_sca, b_sca)
    assert out.shape == (N, out_channels_vector + out_channels_scalar, H, W)
    assert jnp.allclose(out, ref, atol=atol, rtol=rtol)

    # --- Case 2: non-128-divisible H*W (exercises cdiv grid + masked last tile) ---
    N2, H2, W2 = 2, 20, 20  # H*W = 400 = 3*128 + 16
    x2 = jax.random.normal(k_x2, (N2, in_channels, H2, W2), dtype=jnp.float32)
    out2 = jax.block_until_ready(offset_head_forward(x2, w_vec, b_vec, w_sca, b_sca))
    ref2 = _reference(x2, w_vec, b_vec, w_sca, b_sca)
    assert out2.shape == (N2, out_channels_vector + out_channels_scalar, H2, W2)
    assert jnp.allclose(out2, ref2, atol=atol, rtol=rtol)

    print("KERNEL_OK")
</pallas_src>

<mosaic_0001>
module attributes {stable_mosaic.version = 11 : i64} {
  func.func @_offset_head_kernel(%arg0: i32, %arg1: i32, %arg2: memref<1x16x128xf32, #tpu.memory_space<vmem>>, %arg3: memref<16x16xf32, #tpu.memory_space<vmem>>, %arg4: memref<16x1xf32, #tpu.memory_space<vmem>>, %arg5: memref<1x16x128xf32, #tpu.memory_space<vmem>>) attributes {dimension_semantics = [#tpu.dimension_semantics<parallel>, #tpu.dimension_semantics<parallel>], iteration_bounds = array<i64: 2, 2>, scalar_prefetch = 0 : i64, scratch_operands = 0 : i64, tpu.core_type = #tpu.core_type<tc>, window_params = [{transform_indices = @transform_0, window_bounds = array<i64: 1, 16, 128>}, {pipeline_mode = #tpu.pipeline_mode<synchronous>, transform_indices = @transform_1, window_bounds = array<i64: 16, 16>}, {pipeline_mode = #tpu.pipeline_mode<synchronous>, transform_indices = @transform_2, window_bounds = array<i64: 16, 1>}, {transform_indices = @transform_3, window_bounds = array<i64: 1, 16, 128>}]} {
    %c0 = arith.constant 0 : index
    %c0_0 = arith.constant 0 : index
    %c0_1 = arith.constant 0 : index
    %0 = vector.load %arg2[%c0, %c0_0, %c0_1] : memref<1x16x128xf32, #tpu.memory_space<vmem>>, vector<1x16x128xf32>
    %1 = vector.shape_cast %0 : vector<1x16x128xf32> to vector<16x128xf32>
    %2 = arith.truncf %1 : vector<16x128xf32> to vector<16x128xbf16>
    %c0_2 = arith.constant 0 : index
    %c0_3 = arith.constant 0 : index
    %3 = vector.load %arg3[%c0_2, %c0_3] : memref<16x16xf32, #tpu.memory_space<vmem>>, vector<16x16xf32>
    %4 = arith.truncf %3 : vector<16x16xf32> to vector<16x16xbf16>
    %cst = arith.constant dense<0.000000e+00> : vector<16x128xf32>
    %5 = tpu.matmul %4, %2, %cst {dimension_numbers = #tpu.dot_dimension_numbers<[1], [0], [0], [1], [0, 0, 1, 1], [], []>} : vector<16x16xbf16>, vector<16x128xbf16>, vector<16x128xf32> -> vector<16x128xf32>
    %c0_4 = arith.constant 0 : index
    %c0_5 = arith.constant 0 : index
    %6 = vector.load %arg4[%c0_4, %c0_5] : memref<16x1xf32, #tpu.memory_space<vmem>>, vector<16x1xf32>
    %7 = vector.broadcast %6 : vector<16x1xf32> to vector<16x128xf32>
    %8 = arith.addf %5, %7 : vector<16x128xf32>
    %c0_6 = arith.constant 0 : index
    %c0_7 = arith.constant 0 : index
    %c0_8 = arith.constant 0 : index
    %9 = vector.load %arg5[%c0_6, %c0_7, %c0_8] : memref<1x16x128xf32, #tpu.memory_space<vmem>>, vector<1x16x128xf32>
    %10 = vector.shape_cast %9 : vector<1x16x128xf32> to vector<16x128xf32>
    %11 = vector.shape_cast %8 : vector<16x128xf32> to vector<1x16x128xf32>
    tpu.vector_store %arg5[%c0_6, %c0_7, %c0_8], %11 {strides = array<i32>} : memref<1x16x128xf32, #tpu.memory_space<vmem>>, vector<1x16x128xf32>,
    return
  }
  func.func @transform_0(%arg0: i32, %arg1: i32) -> (i32, i32, i32) {
    %c0_i32 = arith.constant 0 : i32
    %c0_i32_0 = arith.constant 0 : i32
    return %arg0, %c0_i32, %arg1 : i32, i32, i32
  }
  func.func @transform_1(%arg0: i32, %arg1: i32) -> (i32, i32) {
    %c0_i32 = arith.constant 0 : i32
    %c0_i32_0 = arith.constant 0 : i32
    %c0_i32_1 = arith.constant 0 : i32
    return %c0_i32, %c0_i32_0 : i32, i32
  }
  func.func @transform_2(%arg0: i32, %arg1: i32) -> (i32, i32) {
    %c0_i32 = arith.constant 0 : i32
    %c0_i32_0 = arith.constant 0 : i32
    %c0_i32_1 = arith.constant 0 : i32
    return %c0_i32, %c0_i32_0 : i32, i32
  }
  func.func @transform_3(%arg0: i32, %arg1: i32) -> (i32, i32, i32) {
    %c0_i32 = arith.constant 0 : i32
    %c0_i32_0 = arith.constant 0 : i32
    return %arg0, %c0_i32, %arg1 : i32, i32, i32
  }
}

</mosaic_0001>

<llo_original>
// kernel: tpu_custom_call.1
$region0: #{tpu_custom_call.1}
  #allocation0 [shape = 'u32[]', space=smem, size = 0x4, offset = 0x4, fixed_abs, tag = 'smem constant byte address 0x4 - core index']
  #allocation1 [shape = 'u32[144,128]{1,0:T(1,128)}', space=vmem, size = 0x12000, scoped, tag = 'internal scratch']
  %s0 = inlined_call_operand.hbm [shape: f32[2,16,256], index: 0, kind: input, shape index: {}]
  %s1 = inlined_call_operand.vmem [shape: f32[16,16], index: 1, kind: input, shape index: {}]
  %s2 = inlined_call_operand.vmem [shape: f32[16,1], index: 2, kind: input, shape index: {}]
  %s3 = inlined_call_operand.hbm [shape: f32[2,16,256], index: 3, kind: output, shape index: {}]
  %s4 = sld [smem:[#allocation0]]
  $region49: #{tpu_custom_call.1} parent=0
    _
  %s6 = ssub.s32 1, %s4
  %s7 = scalar_select 0, %s6, %s4
  $region1: #{tpu_custom_call.1} parent=0
    #allocation2 [shape = 'u8[16384]{0}', space=vmem, size = 0x4000, scoped, tag = 'input window, operand 0']
    #allocation3 [shape = 's32[2]{0}', space=sflag, size = 0x8, scoped, tag = 'scoped memory for tpu_custom_call.1']
    #allocation4 [shape = 's32[2]{0}', space=sflag, size = 0x8, scoped, tag = 'scoped memory for tpu_custom_call.1']
    #allocation5 [shape = 'u8[16384]{0}', space=vmem, size = 0x4000, scoped, tag = 'output window, operand 0']
    %8 = vsyncpa [#allocation3], 0
    %s9 = scalar_lea.sflag [#allocation3], 1
    %10 = vsyncpa %s9, 0
    %11 = vsyncpa [#allocation4], 0
    %s12 = scalar_lea.sflag [#allocation4], 1
    %13 = vsyncpa %s12, 0
    loop: start=0, step=1, limit=6
    $region2: #{tpu_custom_call.1} parent=1 // loop_pre_header
      _
    $region3: #{tpu_custom_call.1} parent=1 // loop_header
      %s15 = sphi 0, %s19
      %p16 = scmp.ge.s32.totalorder %s15, 6
      %s22 = sphi 0, %s34
      %s23 = sphi 0, %s30
      %s24 = sphi 0, %s22
      %s25 = sphi 0, %s23
      %s26 = sphi 0, %s24
      %s27 = sphi 0, %s25
      %s39 = sphi 0, %s41
      %s42 = sphi 0, %s39
      %s43 = sphi 0, %s42
      %s59 = sphi 0, %s43
      %s63 = sphi 0, %s63
      %s65 = sphi 0, %s63
      %s66 = sphi 0, %s65
      %s80 = sphi 0, %s66
      %s84 = sphi 0, %s84
      %s86 = sphi 0, %s84
      %s87 = sphi 0, %s86
      %s101 = sphi 0, %s87
      %s109 = sphi 0, %s111
      %s112 = sphi 0, %s109
      %s113 = sphi 0, %s112
      %s129 = sphi 0, %s113
    $region4: #{tpu_custom_call.1} parent=1 // loop_header_branch
      %18 = sbr.rel (%p16) target = $region8
    $region5: #{tpu_custom_call.1} parent=1 // loop_body
      %s20 = ssub.s32 %s15, 1
      %s21 = ssub.s32 %s15, 2
      %s28 = sadd.s32 1, %s23
      %p29 = scmp.ge.s32.totalorder %s28, 2
      %s30 = scalar_select %p29, 0, %s28
      %s31 = sadd.s32 1, %s22
      %s32 = scalar_select %p29, %s31, %s22
      %p33 = scmp.ge.s32.totalorder %s32, 2
      %s34 = scalar_select %p33, 0, %s32
      %s35 = ssub.s32 %s22, %s34
      %s36 = ssub.s32 %s23, %s30
      %s37 = sor.u32 %s35, %s36
      %p38 = scmp.eq.s32.totalorder %s37, 0
      %s40 = sadd.s32 %s39, 1
      %s41 = scalar_select %p38, %s39, %s40
      %p44 = pneg %p38
      %p45 = scmp.eq.s32.totalorder %s15, 3
      %p46 = por %p44, %p45
      %p47 = scmp.ne.s32.totalorder %s39, %s42
      %p48 = scmp.eq.s32.totalorder %s15, 0
      %p49 = por %p47, %p48
      %p50 = scmp.ne.s32.totalorder %s39, %s42
      %p51 = scmp.eq.s32.totalorder %s20, 3
      %p52 = por %p50, %p51
      %p53 = scmp.ne.s32.totalorder %s42, %s43
      %p54 = scmp.eq.s32.totalorder %s20, 0
      %p55 = por %p53, %p54
      %p56 = scmp.ne.s32.totalorder %s42, %s43
      %p57 = scmp.eq.s32.totalorder %s21, 3
      %p58 = por %p56, %p57
      %p60 = scmp.ne.s32.totalorder %s43, %s59
      %p61 = scmp.eq.s32.totalorder %s21, 0
      %p62 = por %p60, %p61
      %s64 = sadd.s32 %s63, 1
      %p67 = scmp.eq.s32.totalorder %s15, 3
      %p68 = scmp.ne.s32.totalorder %s63, %s65
      %p69 = scmp.eq.s32.totalorder %s15, 0
      %p70 = por %p68, %p69
      %p71 = scmp.ne.s32.totalorder %s63, %s65
      %p72 = scmp.eq.s32.totalorder %s20, 3
      %p73 = por %p71, %p72
      %p74 = scmp.ne.s32.totalorder %s65, %s66
      %p75 = scmp.eq.s32.totalorder %s20, 0
      %p76 = por %p74, %p75
      %p77 = scmp.ne.s32.totalorder %s65, %s66
      %p78 = scmp.eq.s32.totalorder %s21, 3
      %p79 = por %p77, %p78
      %p81 = scmp.ne.s32.totalorder %s66, %s80
      %p82 = scmp.eq.s32.totalorder %s21, 0
      %p83 = por %p81, %p82
      %s85 = sadd.s32 %s84, 1
      %p88 = scmp.eq.s32.totalorder %s15, 3
      %p89 = scmp.ne.s32.totalorder %s84, %s86
      %p90 = scmp.eq.s32.totalorder %s15, 0
      %p91 = por %p89, %p90
      %p92 = scmp.ne.s32.totalorder %s84, %s86
      %p93 = scmp.eq.s32.totalorder %s20, 3
      %p94 = por %p92, %p93
      %p95 = scmp.ne.s32.totalorder %s86, %s87
      %p96 = scmp.eq.s32.totalorder %s20, 0
      %p97 = por %p95, %p96
      %p98 = scmp.ne.s32.totalorder %s86, %s87
      %p99 = scmp.eq.s32.totalorder %s21, 3
      %p100 = por %p98, %p99
      %p102 = scmp.ne.s32.totalorder %s87, %s101
      %p103 = scmp.eq.s32.totalorder %s21, 0
      %p104 = por %p102, %p103
      %s105 = ssub.s32 %s22, %s34
      %s106 = ssub.s32 %s23, %s30
      %s107 = sor.u32 %s105, %s106
      %p108 = scmp.eq.s32.totalorder %s107, 0
      %s110 = sadd.s32 %s109, 1
      %s111 = scalar_select %p108, %s109, %s110
      %p114 = pneg %p108
      %p115 = scmp.eq.s32.totalorder %s15, 3
      %p116 = por %p114, %p115
      %p117 = scmp.ne.s32.totalorder %s109, %s112
      %p118 = scmp.eq.s32.totalorder %s15, 0
      %p119 = por %p117, %p118
      %p120 = scmp.ne.s32.totalorder %s109, %s112
      %p121 = scmp.eq.s32.totalorder %s20, 3
      %p122 = por %p120, %p121
      %p123 = scmp.ne.s32.totalorder %s112, %s113
      %p124 = scmp.eq.s32.totalorder %s20, 0
      %p125 = por %p123, %p124
      %p126 = scmp.ne.s32.totalorder %s112, %s113
      %p127 = scmp.eq.s32.totalorder %s21, 3
      %p128 = por %p126, %p127
      %p130 = scmp.ne.s32.totalorder %s113, %s129
      %p131 = scmp.eq.s32.totalorder %s21, 0
      %p132 = por %p130, %p131
      %p133 = scmp.le.s32.totalorder 1, %s15
      %p134 = scmp.lt.s32.totalorder %s15, 5
      %p135 = pnand %p133, %p134
      %p136 = pneg %p135
      // Predicated region
      $region9: #{tpu_custom_call.1} parent=5 // pred_check
        _
      $region10: #{tpu_custom_call.1} parent=5 // pred_check_branch
        %138 = sbr.rel (%p135) target = $region12
      $region11: #{tpu_custom_call.1} parent=5 // pred_region
        %s139 = ssub.s32 %s15, 1
        // Predicated region
        $region13: #{tpu_custom_call.1} parent=11 // pred_check
          %p140 = pneg %p76
        $region14: #{tpu_custom_call.1} parent=11 // pred_check_branch
          %142 = sbr.rel (%p140) target = $region16
        $region15: #{tpu_custom_call.1} parent=11 // pred_region
          _
        $region16: #{tpu_custom_call.1} parent=11 // pred_fallthru
          _
        // Predicated region
        $region17: #{tpu_custom_call.1} parent=11 // pred_check
          %p143 = pneg %p97
        $region18: #{tpu_custom_call.1} parent=11 // pred_check_branch
          %145 = sbr.rel (%p143) target = $region20
        $region19: #{tpu_custom_call.1} parent=11 // pred_region
          _
        $region20: #{tpu_custom_call.1} parent=11 // pred_fallthru
          _
      $region12: #{tpu_custom_call.1} parent=5 // pred_fallthru
        _
      %p146 = scmp.lt.s32.totalorder %s15, 4
      // Predicated region
      $region21: #{tpu_custom_call.1} parent=5 // pred_check
        %p147 = pneg %p146
      $region22: #{tpu_custom_call.1} parent=5 // pred_check_branch
        %149 = sbr.rel (%p147) target = $region24
      $region23: #{tpu_custom_call.1} parent=5 // pred_region
        // Predicated region
        $region25: #{tpu_custom_call.1} parent=23 // pred_check
          %p150 = pneg %p49
        $region26: #{tpu_custom_call.1} parent=23 // pred_check_branch
          %152 = sbr.rel (%p150) target = $region28
        $region27: #{tpu_custom_call.1} parent=23 // pred_region
          %s153 = sand.u32 %s39, 1
          %s154 = scalar_lea.sflag [#allocation3], %s153
          %s155 = sand.u32 %s39, 1
          %s156 = smul.addr %s155, 16
          %s157 = scalar_lea.vmem [#allocation2], %s156
          %s159 = ssub.s32 256, 256
          %160 = vsyncadd %s154, %s159
          %s161 = smul.addr %s22, 4
          %s162 = sadd.s32 %s23, %s161
          %s163 = smul.addr %s162, 128
          %s164 = scalar_lea.hbm %s0, %s163
          %s165 = sshll.u32 %s157, 4
          %s166 = int_to_ptr.vmem [resolvable:$true] %s165
          %171 = dma.hbm_to_vmem [thread:$0]  %s164, 256, %s166, %s154, 256, 128, 8
        $region28: #{tpu_custom_call.1} parent=23 // pred_fallthru
          _
      $region24: #{tpu_custom_call.1} parent=5 // pred_fallthru
        _
      %p172 = scmp.le.s32.totalorder 1, %s15
      %p173 = scmp.lt.s32.totalorder %s15, 5
      %p174 = pnand %p172, %p173
      %p175 = pneg %p174
      // Predicated region
      $region29: #{tpu_custom_call.1} parent=5 // pred_check
        _
      $region30: #{tpu_custom_call.1} parent=5 // pred_check_branch
        %177 = sbr.rel (%p174) target = $region32
      $region31: #{tpu_custom_call.1} parent=5 // pred_region
        %s178 = ssub.s32 %s15, 1
        %s179 = sand.u32 %s42, 1
        %s180 = scalar_lea.sflag [#allocation3], %s179
        %s181 = sand.u32 %s42, 1
        %s182 = smul.addr %s181, 16
        %s183 = scalar_lea.vmem [#allocation2], %s182
        // Predicated region
        $region33: #{tpu_custom_call.1} parent=31 // pred_check
          %p184 = pneg %p55
        $region34: #{tpu_custom_call.1} parent=31 // pred_check_branch
          %186 = sbr.rel (%p184) target = $region36
        $region35: #{tpu_custom_call.1} parent=31 // pred_region
          %187 = dma.done %s180, 256
        $region36: #{tpu_custom_call.1} parent=31 // pred_fallthru
          _
        %s188 = sand.u32 %s42, 1
        %s189 = scalar_lea.sflag [#allocation3], %s188
        %s190 = sand.u32 %s42, 1
        %s191 = smul.addr %s190, 16
        %s192 = scalar_lea.vmem [#allocation2], %s191
        %p193 = pneg %p55
        %p194 = pneg %p52
        %p195 = pneg %p76
        %p196 = pneg %p73
        %p197 = pneg %p97
        %p198 = pneg %p94
        %p199 = pneg %p125
        %p200 = pneg %p122
        %s201 = sand.u32 %s112, 1
        %s202 = scalar_lea.sflag [#allocation4], %s201
        %s203 = sand.u32 %s112, 1
        %s204 = smul.addr %s203, 16
        %s205 = scalar_lea.vmem [#allocation5], %s204
        %v207 = vld [vmem:[%s183] sm:$0xff]
        %v208 = vld [vmem:[%s183 + $0x8] sm:$0xff]
        %v209 = vpack.c.bf16 %v208, %v207
        %v210 = vld [vmem:[%s1] sm:$0xff]
        %v211 = vld [vmem:[%s1 + $0x8] sm:$0xff]
        %v212 = vpack.c.bf16 %v211, %v210
        %v213 = vld [vmem:[%s2] sm:$0xff]
        %v214 = vld [vmem:[%s2 + $0x8] sm:$0xff]
        %216 = vset.pattern.permute.xlu0 0
        %217 = vperm.xlu0 %216, %v213
        %v218 = vpop.permute.xlu0 %217
        %221 = vset.pattern.permute.xlu0 0
        %222 = vperm.xlu0 %221, %v214
        %v223 = vpop.permute.xlu0 %222
        %vm225 = vcmask 130048
        %v227 = vsel %vm225, %v212, 0
        %229 = vmatprep.subr.bf16.mxu0 0
        %230 = vmatpush1.bf16.msra.mxu0 %v209
        %231 = vmatprep.subr.bf16.mxu0 0
        %232 = vmatpush1.bf16.msra.mxu0 0
        %233 = vmatprep.subr.bf16.mxu0 0
        %234 = vmatpush1.bf16.msra.mxu0 0
        %235 = vmatprep.subr.bf16.mxu0 0
        %236 = vmatpush1.bf16.msra.mxu0 0
        %237 = vmatprep.subr.bf16.mxu0 0
        %238 = vmatpush1.bf16.msra.mxu0 0
        %239 = vmatprep.subr.bf16.mxu0 0
        %240 = vmatpush1.bf16.msra.mxu0 0
        %241 = vmatprep.subr.bf16.mxu0 0
        %242 = vmatpush1.bf16.msra.mxu0 0
        %243 = vmatprep.subr.bf16.mxu0 0
        %244 = vmatpush1.bf16.msra.mxu0 0
        %245 = vmatprep.subr.bf16.mxu0 0
        %246 = vmatpush1.bf16.msra.mxu0 0
        %247 = vmatprep.subr.bf16.mxu0 0
        %248 = vmatpush1.bf16.msra.mxu0 0
        %249 = vmatprep.subr.bf16.mxu0 0
        %250 = vmatpush1.bf16.msra.mxu0 0
        %251 = vmatprep.subr.bf16.mxu0 0
        %252 = vmatpush1.bf16.msra.mxu0 0
        %253 = vmatprep.subr.bf16.mxu0 0
        %254 = vmatpush1.bf16.msra.mxu0 0
        %255 = vmatprep.subr.bf16.mxu0 0
        %256 = vmatpush1.bf16.msra.mxu0 0
        %257 = vmatprep.subr.bf16.mxu0 0
        %258 = vmatpush1.bf16.msra.mxu0 0
        %259 = vmatprep.subr.bf16.mxu0 0
        %260 = vmatpush1.bf16.msra.mxu0 0
        %261 = vmatprep.mubr.bf16.mxu0 0
        %262 = vmatmul.mubr.bf16.gmra.mrb[0].mxu0 %v227
        %v263 = vpop.f32.mrb[0].mxu0
        %v264 = vadd.f32 %v218, %v263
        %v265 = vpop.f32.mrb[0].mxu0
        %v266 = vpop.f32.mrb[0].mxu0
        %v267 = vadd.f32 %v223, %v266
        %v268 = vpop.f32.mrb[0].mxu0
        %269 = vdwg.mxu0
        %270 = vst [vmem:[%s205] sm:$0xff] %v264
        %271 = vst [vmem:[%s205 + $0x8] sm:$0xff] %v267
        %s272 = sand.u32 %s112, 1
        %s273 = scalar_lea.sflag [#allocation4], %s272
        %s274 = sand.u32 %s112, 1
        %s275 = smul.addr %s274, 16
        %s276 = scalar_lea.vmem [#allocation5], %s275
        // Predicated region
        $region37: #{tpu_custom_call.1} parent=31 // pred_check
          %p277 = pneg %p122
        $region38: #{tpu_custom_call.1} parent=31 // pred_check_branch
          %279 = sbr.rel (%p277) target = $region40
        $region39: #{tpu_custom_call.1} parent=31 // pred_region
          %s281 = ssub.s32 256, 256
          %282 = vsyncadd %s273, %s281
          %s283 = smul.addr %s24, 4
          %s284 = sadd.s32 %s25, %s283
          %s285 = smul.addr %s284, 128
          %s286 = scalar_lea.hbm %s3, %s285
          %s287 = sshll.u32 %s276, 4
          %s288 = int_to_ptr.vmem [resolvable:$true] %s287
          %293 = dma.vmem_to_hbm [thread:$0]  %s288, 256, %s286, %s273, 128, 256, 8
        $region40: #{tpu_custom_call.1} parent=31 // pred_fallthru
          _
      $region32: #{tpu_custom_call.1} parent=5 // pred_fallthru
        _
      %p294 = scmp.le.s32.totalorder 2, %s15
      // Predicated region
      $region41: #{tpu_custom_call.1} parent=5 // pred_check
        %p295 = pneg %p294
      $region42: #{tpu_custom_call.1} parent=5 // pred_check_branch
        %297 = sbr.rel (%p295) target = $region44
      $region43: #{tpu_custom_call.1} parent=5 // pred_region
        %s298 = ssub.s32 %s15, 2
        // Predicated region
        $region45: #{tpu_custom_call.1} parent=43 // pred_check
          %p299 = pneg %p128
        $region46: #{tpu_custom_call.1} parent=43 // pred_check_branch
          %301 = sbr.rel (%p299) target = $region48
        $region47: #{tpu_custom_call.1} parent=43 // pred_region
          %s302 = sand.u32 %s113, 1
          %s303 = scalar_lea.sflag [#allocation4], %s302
          %s304 = sand.u32 %s113, 1
          %s305 = smul.addr %s304, 16
          %s306 = scalar_lea.vmem [#allocation5], %s305
          %307 = dma.done %s303, 256
        $region48: #{tpu_custom_call.1} parent=43 // pred_fallthru
          _
      $region44: #{tpu_custom_call.1} parent=5 // pred_fallthru
        _
    $region6: #{tpu_custom_call.1} parent=1 // loop_footer
      %s19 = sadd.s32 1, %s15
    $region7: #{tpu_custom_call.1} parent=1 // loop_footer_branch
      %14 = sbr.rel target = $region3
    $region8: #{tpu_custom_call.1} parent=1 // loop_exit
      _
    %308 = vsyncpa [#allocation3], 1
    %s309 = scalar_lea.sflag [#allocation3], 1
    %310 = vsyncpa %s309, 1
    %311 = vsyncpa [#allocation4], 1
    %s312 = scalar_lea.sflag [#allocation4], 1
    %313 = vsyncpa %s312, 1

</llo_original>
